<compile_context>
chip_gen: v5e
topology: v5e:2x2
jax: 0.10.0
libtpu: 0.0.40
codegen_flags: <defaults>
</compile_context>

<pallas_src>
import math

import jax
import jax.numpy as jnp
from jax import lax
from jax.experimental import pallas as pl
from jax.experimental.pallas import tpu as pltpu


def _rope_kernel(x_ref, cos_ref, sin_ref, o_ref):
    """x_ref/o_ref: (1, TS, D) block of one batch element; cos/sin_ref: (TS, D).

    out[2k]   = x[2k]  *cos_k - x[2k+1]*sin_k
    out[2k+1] = x[2k+1]*cos_k + x[2k]  *sin_k
    implemented as  out = x*cos_il + pair_swap(x)*sin_il  with the sign already
    baked into sin_il (even lanes -sin, odd lanes +sin).
    """
    x = x_ref[0].astype(jnp.float32)          # (TS, D)
    c = cos_ref[...].astype(jnp.float32)      # (TS, D)
    s = sin_ref[...].astype(jnp.float32)      # (TS, D), signed

    # Pair swap along the lane dim: swapped[..., i] = x[..., i ^ 1].
    # jnp.roll semantics: roll(x, k)[i] = x[(i - k) mod D], so
    #   roll(x, -1)[i] = x[i+1]   (partner for even lanes)
    #   roll(x, +1)[i] = x[i-1]   (partner for odd lanes)
    # Wrap-around lanes are never selected by the parity mask.
    nbr_hi = jnp.roll(x, -1, axis=-1)
    nbr_lo = jnp.roll(x, 1, axis=-1)
    lane = lax.broadcasted_iota(jnp.int32, x.shape, 1)
    swapped = jnp.where((lane & 1) == 0, nbr_hi, nbr_lo)

    o_ref[0] = (x * c + swapped * s).astype(o_ref.dtype)


def make_rotary_tables(d_model: int, seq_len: int, dtype=jnp.float32):
    """Interleaved cos/sin tables, (seq_len, d_model) each.

    cos_il[:, 2k] = cos_il[:, 2k+1] = cos(angle_k)
    sin_il[:, 2k] = -sin(angle_k), sin_il[:, 2k+1] = +sin(angle_k)
    """
    dh = d_model // 2
    idx = jnp.arange(dh, dtype=jnp.float32)
    # NOTE: faithful to the PyTorch module's (non-standard) theta exponent; do not "fix".
    thetas = 10000.0 ** (-2.0 * (idx - 1.0) / d_model)
    angles = jnp.outer(jnp.arange(seq_len, dtype=jnp.float32), thetas)
    angles = jnp.mod(angles, 2.0 * math.pi)
    c = jnp.cos(angles)
    s = jnp.sin(angles)
    cos_il = jnp.stack([c, c], axis=-1).reshape(seq_len, d_model)
    sin_il = jnp.stack([-s, s], axis=-1).reshape(seq_len, d_model)
    return cos_il.astype(dtype), sin_il.astype(dtype)


def _choose_seq_tile(seq_len: int, d_model: int, itemsize: int,
                     vmem_budget_bytes: int = 24 * 1024 * 1024) -> int:
    """Largest seq tile (multiple of 8, dividing seq_len) whose double-buffered
    working set (x + out + cos + sin ~= 8 blocks) stays under the VMEM budget.
    Sized for v7x's smaller VMEM; v5e/v6e have more headroom."""
    if seq_len % 8 != 0:
        return seq_len                      # full-extent block is always layout-legal
    max_rows = max(8, vmem_budget_bytes // (8 * d_model * itemsize))
    for cand in (1024, 512, 256, 128, 64, 32, 16, 8):
        if cand <= max_rows and seq_len % cand == 0:
            return cand
    return 8


def rotary_embedding_with_complexs(x: jax.Array, cos_il: jax.Array, sin_il: jax.Array,
                                   *, ts: int | None = None,
                                   vmem_limit_bytes: int = 32 * 1024 * 1024) -> jax.Array:
    """x: (B, S, D) float; cos_il/sin_il: (S, D) interleaved tables. Returns (B, S, D)."""
    B, S, D = x.shape
    assert D % 2 == 0, "d_model must be even"
    assert cos_il.shape == (S, D) and sin_il.shape == (S, D)

    if ts is None:
        ts = _choose_seq_tile(S, D, jnp.dtype(x.dtype).itemsize)
    assert S % ts == 0

    # Grid: S-tiles OUTER, batch INNER -> cos/sin block index is constant across the
    # inner (batch) iterations, so the tables are DMA'd once per S-tile only.
    grid = (S // ts, B)

    x_spec = pl.BlockSpec((1, ts, D), lambda s, b: (b, s, 0))
    tbl_spec = pl.BlockSpec((ts, D), lambda s, b: (s, 0))
    out_spec = pl.BlockSpec((1, ts, D), lambda s, b: (b, s, 0))   # lane-dense D-wide store

    return pl.pallas_call(
        _rope_kernel,
        out_shape=jax.ShapeDtypeStruct((B, S, D), x.dtype),
        grid_spec=pl.GridSpec(
            grid=grid,
            in_specs=[x_spec, tbl_spec, tbl_spec],
            out_specs=out_spec,
        ),
        compiler_params=pltpu.CompilerParams(
            # Both axes independent -> shardable across v7x's 2 TensorCores.
            dimension_semantics=("parallel", "parallel"),
            vmem_limit_bytes=vmem_limit_bytes,
        ),
    )(x, cos_il, sin_il)


def _reference(x: jax.Array) -> jax.Array:
    """Pure-JAX reference mirroring the PyTorch module (complex multiply)."""
    B, S, D = x.shape
    dh = D // 2
    idx = jnp.arange(dh, dtype=jnp.float32)
    thetas = 10000.0 ** (-2.0 * (idx - 1.0) / D)
    angles = jnp.mod(jnp.outer(jnp.arange(S, dtype=jnp.float32), thetas), 2.0 * math.pi)
    c, s = jnp.cos(angles), jnp.sin(angles)
    xp = x.astype(jnp.float32).reshape(B, S, dh, 2)
    xr, xi = xp[..., 0], xp[..., 1]
    orr = xr * c - xi * s
    oii = xr * s + xi * c
    return jnp.stack([orr, oii], axis=-1).reshape(B, S, D)


if __name__ == "__main__":
    B, S, D = 2, 32, 128          # batch, seq_len, d_model (lane-dense last dim)
    key = jax.random.PRNGKey(0)
    x = jax.random.normal(key, (B, S, D), dtype=jnp.float32)
    ref = _reference(x)

    # f32 path; explicit small seq tile to exercise the (S-tile, batch) grid.
    cos_il, sin_il = make_rotary_tables(D, S, dtype=jnp.float32)
    out = jax.block_until_ready(rotary_embedding_with_complexs(x, cos_il, sin_il, ts=8))
    assert out.shape == (B, S, D)
    assert jnp.allclose(out, ref, atol=1e-5, rtol=1e-5), float(jnp.max(jnp.abs(out - ref)))

    # bf16 I/O variant (half the HBM bytes on v6e/v7x); f32 math inside the kernel.
    xb = x.astype(jnp.bfloat16)
    cos_b, sin_b = make_rotary_tables(D, S, dtype=jnp.bfloat16)
    out_b = jax.block_until_ready(rotary_embedding_with_complexs(xb, cos_b, sin_b))
    assert out_b.dtype == jnp.bfloat16
    assert jnp.allclose(out_b.astype(jnp.float32), ref, atol=5e-2, rtol=5e-2)

    print("KERNEL_OK")
</pallas_src>

<mosaic_0001>
module attributes {stable_mosaic.version = 11 : i64} {
  func.func @_rope_kernel(%arg0: i32, %arg1: i32, %arg2: memref<1x8x128xf32, #tpu.memory_space<vmem>>, %arg3: memref<8x128xf32, #tpu.memory_space<vmem>>, %arg4: memref<8x128xf32, #tpu.memory_space<vmem>>, %arg5: memref<1x8x128xf32, #tpu.memory_space<vmem>>) attributes {dimension_semantics = [#tpu.dimension_semantics<parallel>, #tpu.dimension_semantics<parallel>], iteration_bounds = array<i64: 4, 2>, scalar_prefetch = 0 : i64, scratch_operands = 0 : i64, tpu.core_type = #tpu.core_type<tc>, window_params = [{transform_indices = @transform_0, window_bounds = array<i64: 1, 8, 128>}, {transform_indices = @transform_1, window_bounds = array<i64: 8, 128>}, {transform_indices = @transform_2, window_bounds = array<i64: 8, 128>}, {transform_indices = @transform_3, window_bounds = array<i64: 1, 8, 128>}]} {
    %c0 = arith.constant 0 : index
    %c0_0 = arith.constant 0 : index
    %c0_1 = arith.constant 0 : index
    %0 = vector.load %arg2[%c0, %c0_0, %c0_1] : memref<1x8x128xf32, #tpu.memory_space<vmem>>, vector<1x8x128xf32>
    %1 = vector.shape_cast %0 : vector<1x8x128xf32> to vector<8x128xf32>
    %c0_2 = arith.constant 0 : index
    %c0_3 = arith.constant 0 : index
    %2 = vector.load %arg3[%c0_2, %c0_3] : memref<8x128xf32, #tpu.memory_space<vmem>>, vector<8x128xf32>
    %c0_4 = arith.constant 0 : index
    %c0_5 = arith.constant 0 : index
    %3 = vector.load %arg4[%c0_4, %c0_5] : memref<8x128xf32, #tpu.memory_space<vmem>>, vector<8x128xf32>
    %4 = vector.extract_strided_slice %1 {offsets = [0, 1], sizes = [8, 127], strides = [1, 1]} : vector<8x128xf32> to vector<8x127xf32>
    %5 = vector.extract_strided_slice %1 {offsets = [0, 0], sizes = [8, 1], strides = [1, 1]} : vector<8x128xf32> to vector<8x1xf32>
    %6 = tpu.concatenate %4, %5 in 1 : vector<8x127xf32>, vector<8x1xf32> -> vector<8x128xf32>
    %7 = vector.extract_strided_slice %1 {offsets = [0, 127], sizes = [8, 1], strides = [1, 1]} : vector<8x128xf32> to vector<8x1xf32>
    %8 = vector.extract_strided_slice %1 {offsets = [0, 0], sizes = [8, 127], strides = [1, 1]} : vector<8x128xf32> to vector<8x127xf32>
    %9 = tpu.concatenate %7, %8 in 1 : vector<8x1xf32>, vector<8x127xf32> -> vector<8x128xf32>
    %10 = tpu.iota {dimensions = array<i32: 1>} : vector<8x128xi32>
    %c1_i32 = arith.constant 1 : i32
    %11 = vector.broadcast %c1_i32 : i32 to vector<8x128xi32>
    %12 = arith.andi %10, %11 : vector<8x128xi32>
    %c0_i32 = arith.constant 0 : i32
    %13 = vector.broadcast %c0_i32 : i32 to vector<8x128xi32>
    %14 = arith.cmpi eq, %12, %13 : vector<8x128xi32>
    %15 = arith.select %14, %6, %9 : vector<8x128xi1>, vector<8x128xf32>
    %16 = arith.mulf %1, %2 : vector<8x128xf32>
    %17 = arith.mulf %15, %3 : vector<8x128xf32>
    %18 = arith.addf %16, %17 : vector<8x128xf32>
    %c0_6 = arith.constant 0 : index
    %c0_7 = arith.constant 0 : index
    %c0_8 = arith.constant 0 : index
    %19 = vector.load %arg5[%c0_6, %c0_7, %c0_8] : memref<1x8x128xf32, #tpu.memory_space<vmem>>, vector<1x8x128xf32>
    %20 = vector.shape_cast %19 : vector<1x8x128xf32> to vector<8x128xf32>
    %21 = vector.shape_cast %18 : vector<8x128xf32> to vector<1x8x128xf32>
    tpu.vector_store %arg5[%c0_6, %c0_7, %c0_8], %21 {strides = array<i32>} : memref<1x8x128xf32, #tpu.memory_space<vmem>>, vector<1x8x128xf32>,
    return
  }
  func.func @transform_0(%arg0: i32, %arg1: i32) -> (i32, i32, i32) {
    %c0_i32 = arith.constant 0 : i32
    %c0_i32_0 = arith.constant 0 : i32
    return %arg1, %arg0, %c0_i32 : i32, i32, i32
  }
  func.func @transform_1(%arg0: i32, %arg1: i32) -> (i32, i32) {
    %c0_i32 = arith.constant 0 : i32
    %c0_i32_0 = arith.constant 0 : i32
    return %arg0, %c0_i32 : i32, i32
  }
  func.func @transform_2(%arg0: i32, %arg1: i32) -> (i32, i32) {
    %c0_i32 = arith.constant 0 : i32
    %c0_i32_0 = arith.constant 0 : i32
    return %arg0, %c0_i32 : i32, i32
  }
  func.func @transform_3(%arg0: i32, %arg1: i32) -> (i32, i32, i32) {
    %c0_i32 = arith.constant 0 : i32
    %c0_i32_0 = arith.constant 0 : i32
    return %arg1, %arg0, %c0_i32 : i32, i32, i32
  }
}

</mosaic_0001>

<llo_original>
// kernel: tpu_custom_call.1
$region0: #{tpu_custom_call.1}
  #allocation0 [shape = 'u32[]', space=smem, size = 0x4, offset = 0x4, fixed_abs, tag = 'smem constant byte address 0x4 - core index']
  #allocation1 [shape = 'u32[72,128]{1,0:T(1,128)}', space=vmem, size = 0x9000, scoped, tag = 'internal scratch']
  %s0 = inlined_call_operand.hbm [shape: f32[2,32,128], index: 0, kind: input, shape index: {}]
  %s1 = inlined_call_operand.hbm [shape: f32[32,128], index: 1, kind: input, shape index: {}]
  %s2 = inlined_call_operand.hbm [shape: f32[32,128], index: 2, kind: input, shape index: {}]
  %s3 = inlined_call_operand.hbm [shape: f32[2,32,128], index: 3, kind: output, shape index: {}]
  %s4 = sld [smem:[#allocation0]]
  $region57: #{tpu_custom_call.1} parent=0
    _
  %s6 = ssub.s32 1, %s4
  %s7 = scalar_select 0, %s6, %s4
  $region1: #{tpu_custom_call.1} parent=0
    #allocation2 [shape = 'u8[8192]{0}', space=vmem, size = 0x2000, scoped, tag = 'input window, operand 0']
    #allocation3 [shape = 's32[2]{0}', space=sflag, size = 0x8, scoped, tag = 'scoped memory for tpu_custom_call.1']
    #allocation4 [shape = 's32[2]{0}', space=sflag, size = 0x8, scoped, tag = 'scoped memory for tpu_custom_call.1']
    #allocation5 [shape = 'u8[8192]{0}', space=vmem, size = 0x2000, scoped, tag = 'input window, operand 1']
    #allocation6 [shape = 's32[2]{0}', space=sflag, size = 0x8, scoped, tag = 'scoped memory for tpu_custom_call.1']
    #allocation7 [shape = 'u8[8192]{0}', space=vmem, size = 0x2000, scoped, tag = 'input window, operand 2']
    #allocation8 [shape = 'u8[8192]{0}', space=vmem, size = 0x2000, scoped, tag = 'output window, operand 0']
    %8 = vsyncpa [#allocation3], 0
    %s9 = scalar_lea.sflag [#allocation3], 1
    %10 = vsyncpa %s9, 0
    %11 = vsyncpa [#allocation6], 0
    %s12 = scalar_lea.sflag [#allocation6], 1
    %13 = vsyncpa %s12, 0
    %14 = vsyncpa [#allocation4], 0
    %s15 = scalar_lea.sflag [#allocation4], 1
    %16 = vsyncpa %s15, 0
    loop: start=0, step=1, limit=10
    $region2: #{tpu_custom_call.1} parent=1 // loop_pre_header
      _
    $region3: #{tpu_custom_call.1} parent=1 // loop_header
      %s18 = sphi 0, %s22
      %p19 = scmp.ge.s32.totalorder %s18, 10
      %s25 = sphi 0, %s37
      %s26 = sphi 0, %s33
      %s27 = sphi 0, %s25
      %s28 = sphi 0, %s26
      %s29 = sphi 0, %s27
      %s30 = sphi 0, %s28
      %s42 = sphi 0, %s44
      %s45 = sphi 0, %s42
      %s46 = sphi 0, %s45
      %s62 = sphi 0, %s46
      %s68 = sphi 0, %s70
      %s71 = sphi 0, %s68
      %s72 = sphi 0, %s71
      %s88 = sphi 0, %s72
      %s94 = sphi 0, %s96
      %s97 = sphi 0, %s94
      %s98 = sphi 0, %s97
      %s114 = sphi 0, %s98
      %s122 = sphi 0, %s124
      %s125 = sphi 0, %s122
      %s126 = sphi 0, %s125
      %s142 = sphi 0, %s126
    $region4: #{tpu_custom_call.1} parent=1 // loop_header_branch
      %21 = sbr.rel (%p19) target = $region8
    $region5: #{tpu_custom_call.1} parent=1 // loop_body
      %s23 = ssub.s32 %s18, 1
      %s24 = ssub.s32 %s18, 2
      %s31 = sadd.s32 1, %s26
      %p32 = scmp.ge.s32.totalorder %s31, 2
      %s33 = scalar_select %p32, 0, %s31
      %s34 = sadd.s32 1, %s25
      %s35 = scalar_select %p32, %s34, %s25
      %p36 = scmp.ge.s32.totalorder %s35, 4
      %s37 = scalar_select %p36, 0, %s35
      %s38 = ssub.s32 %s26, %s33
      %s39 = ssub.s32 %s25, %s37
      %s40 = sor.u32 %s38, %s39
      %p41 = scmp.eq.s32.totalorder %s40, 0
      %s43 = sadd.s32 %s42, 1
      %s44 = scalar_select %p41, %s42, %s43
      %p47 = pneg %p41
      %p48 = scmp.eq.s32.totalorder %s18, 7
      %p49 = por %p47, %p48
      %p50 = scmp.ne.s32.totalorder %s42, %s45
      %p51 = scmp.eq.s32.totalorder %s18, 0
      %p52 = por %p50, %p51
      %p53 = scmp.ne.s32.totalorder %s42, %s45
      %p54 = scmp.eq.s32.totalorder %s23, 7
      %p55 = por %p53, %p54
      %p56 = scmp.ne.s32.totalorder %s45, %s46
      %p57 = scmp.eq.s32.totalorder %s23, 0
      %p58 = por %p56, %p57
      %p59 = scmp.ne.s32.totalorder %s45, %s46
      %p60 = scmp.eq.s32.totalorder %s24, 7
      %p61 = por %p59, %p60
      %p63 = scmp.ne.s32.totalorder %s46, %s62
      %p64 = scmp.eq.s32.totalorder %s24, 0
      %p65 = por %p63, %p64
      %s66 = ssub.s32 %s25, %s37
      %p67 = scmp.eq.s32.totalorder %s66, 0
      %s69 = sadd.s32 %s68, 1
      %s70 = scalar_select %p67, %s68, %s69
      %p73 = pneg %p67
      %p74 = scmp.eq.s32.totalorder %s18, 7
      %p75 = por %p73, %p74
      %p76 = scmp.ne.s32.totalorder %s68, %s71
      %p77 = scmp.eq.s32.totalorder %s18, 0
      %p78 = por %p76, %p77
      %p79 = scmp.ne.s32.totalorder %s68, %s71
      %p80 = scmp.eq.s32.totalorder %s23, 7
      %p81 = por %p79, %p80
      %p82 = scmp.ne.s32.totalorder %s71, %s72
      %p83 = scmp.eq.s32.totalorder %s23, 0
      %p84 = por %p82, %p83
      %p85 = scmp.ne.s32.totalorder %s71, %s72
      %p86 = scmp.eq.s32.totalorder %s24, 7
      %p87 = por %p85, %p86
      %p89 = scmp.ne.s32.totalorder %s72, %s88
      %p90 = scmp.eq.s32.totalorder %s24, 0
      %p91 = por %p89, %p90
      %s92 = ssub.s32 %s25, %s37
      %p93 = scmp.eq.s32.totalorder %s92, 0
      %s95 = sadd.s32 %s94, 1
      %s96 = scalar_select %p93, %s94, %s95
      %p99 = pneg %p93
      %p100 = scmp.eq.s32.totalorder %s18, 7
      %p101 = por %p99, %p100
      %p102 = scmp.ne.s32.totalorder %s94, %s97
      %p103 = scmp.eq.s32.totalorder %s18, 0
      %p104 = por %p102, %p103
      %p105 = scmp.ne.s32.totalorder %s94, %s97
      %p106 = scmp.eq.s32.totalorder %s23, 7
      %p107 = por %p105, %p106
      %p108 = scmp.ne.s32.totalorder %s97, %s98
      %p109 = scmp.eq.s32.totalorder %s23, 0
      %p110 = por %p108, %p109
      %p111 = scmp.ne.s32.totalorder %s97, %s98
      %p112 = scmp.eq.s32.totalorder %s24, 7
      %p113 = por %p111, %p112
      %p115 = scmp.ne.s32.totalorder %s98, %s114
      %p116 = scmp.eq.s32.totalorder %s24, 0
      %p117 = por %p115, %p116
      %s118 = ssub.s32 %s26, %s33
      %s119 = ssub.s32 %s25, %s37
      %s120 = sor.u32 %s118, %s119
      %p121 = scmp.eq.s32.totalorder %s120, 0
      %s123 = sadd.s32 %s122, 1
      %s124 = scalar_select %p121, %s122, %s123
      %p127 = pneg %p121
      %p128 = scmp.eq.s32.totalorder %s18, 7
      %p129 = por %p127, %p128
      %p130 = scmp.ne.s32.totalorder %s122, %s125
      %p131 = scmp.eq.s32.totalorder %s18, 0
      %p132 = por %p130, %p131
      %p133 = scmp.ne.s32.totalorder %s122, %s125
      %p134 = scmp.eq.s32.totalorder %s23, 7
      %p135 = por %p133, %p134
      %p136 = scmp.ne.s32.totalorder %s125, %s126
      %p137 = scmp.eq.s32.totalorder %s23, 0
      %p138 = por %p136, %p137
      %p139 = scmp.ne.s32.totalorder %s125, %s126
      %p140 = scmp.eq.s32.totalorder %s24, 7
      %p141 = por %p139, %p140
      %p143 = scmp.ne.s32.totalorder %s126, %s142
      %p144 = scmp.eq.s32.totalorder %s24, 0
      %p145 = por %p143, %p144
      %p146 = scmp.le.s32.totalorder 1, %s18
      %p147 = scmp.lt.s32.totalorder %s18, 9
      %p148 = pnand %p146, %p147
      %p149 = pneg %p148
      // Predicated region
      $region9: #{tpu_custom_call.1} parent=5 // pred_check
        _
      $region10: #{tpu_custom_call.1} parent=5 // pred_check_branch
        %151 = sbr.rel (%p148) target = $region12
      $region11: #{tpu_custom_call.1} parent=5 // pred_region
        %s152 = ssub.s32 %s18, 1
      $region12: #{tpu_custom_call.1} parent=5 // pred_fallthru
        _
      %p153 = scmp.lt.s32.totalorder %s18, 8
      // Predicated region
      $region13: #{tpu_custom_call.1} parent=5 // pred_check
        %p154 = pneg %p153
      $region14: #{tpu_custom_call.1} parent=5 // pred_check_branch
        %156 = sbr.rel (%p154) target = $region16
      $region15: #{tpu_custom_call.1} parent=5 // pred_region
        // Predicated region
        $region17: #{tpu_custom_call.1} parent=15 // pred_check
          %p157 = pneg %p52
        $region18: #{tpu_custom_call.1} parent=15 // pred_check_branch
          %159 = sbr.rel (%p157) target = $region20
        $region19: #{tpu_custom_call.1} parent=15 // pred_region
          %s160 = sand.u32 %s42, 1
          %s161 = scalar_lea.sflag [#allocation3], %s160
          %s162 = sand.u32 %s42, 1
          %s163 = smul.addr %s162, 8
          %s164 = scalar_lea.vmem [#allocation2], %s163
          %166 = vsyncadd %s161, 0
          %s167 = smul.addr %s26, 4
          %s168 = sadd.s32 %s25, %s167
          %s169 = smul.addr %s168, 8
          %s170 = scalar_lea.hbm %s0, %s169
          %s172 = sshll.u32 %s170, 4
          %s173 = int_to_ptr.hbm [resolvable:$true] %s172
          %s174 = sshll.u32 %s164, 4
          %s175 = int_to_ptr.vmem [resolvable:$true] %s174
          %177 = dma.hbm_to_vmem [thread:$0]  %s173, 128, %s175, %s161
        $region20: #{tpu_custom_call.1} parent=15 // pred_fallthru
          _
        // Predicated region
        $region21: #{tpu_custom_call.1} parent=15 // pred_check
          %p178 = pneg %p78
        $region22: #{tpu_custom_call.1} parent=15 // pred_check_branch
          %180 = sbr.rel (%p178) target = $region24
        $region23: #{tpu_custom_call.1} parent=15 // pred_region
          %s181 = sand.u32 %s18, 1
          %s182 = scalar_lea.sflag [#allocation6], %s181
          %s183 = sand.u32 %s68, 1
          %s184 = smul.addr %s183, 8
          %s185 = scalar_lea.vmem [#allocation5], %s184
          %187 = vsyncadd %s182, 0
          %s188 = smul.addr %s25, 8
          %s189 = scalar_lea.hbm %s1, %s188
          %s191 = sshll.u32 %s189, 4
          %s192 = int_to_ptr.hbm [resolvable:$true] %s191
          %s193 = sshll.u32 %s185, 4
          %s194 = int_to_ptr.vmem [resolvable:$true] %s193
          %196 = dma.hbm_to_vmem [thread:$0]  %s192, 128, %s194, %s182
        $region24: #{tpu_custom_call.1} parent=15 // pred_fallthru
          _
        // Predicated region
        $region25: #{tpu_custom_call.1} parent=15 // pred_check
          %p197 = pneg %p104
        $region26: #{tpu_custom_call.1} parent=15 // pred_check_branch
          %199 = sbr.rel (%p197) target = $region28
        $region27: #{tpu_custom_call.1} parent=15 // pred_region
          %s200 = sand.u32 %s18, 1
          %s201 = scalar_lea.sflag [#allocation6], %s200
          %s202 = sand.u32 %s94, 1
          %s203 = smul.addr %s202, 8
          %s204 = scalar_lea.vmem [#allocation7], %s203
          %206 = vsyncadd %s201, 0
          %s207 = smul.addr %s25, 8
          %s208 = scalar_lea.hbm %s2, %s207
          %s210 = sshll.u32 %s208, 4
          %s211 = int_to_ptr.hbm [resolvable:$true] %s210
          %s212 = sshll.u32 %s204, 4
          %s213 = int_to_ptr.vmem [resolvable:$true] %s212
          %215 = dma.hbm_to_vmem [thread:$0]  %s211, 128, %s213, %s201
        $region28: #{tpu_custom_call.1} parent=15 // pred_fallthru
          _
      $region16: #{tpu_custom_call.1} parent=5 // pred_fallthru
        _
      %p216 = scmp.le.s32.totalorder 1, %s18
      %p217 = scmp.lt.s32.totalorder %s18, 9
      %p218 = pnand %p216, %p217
      %p219 = pneg %p218
      // Predicated region
      $region29: #{tpu_custom_call.1} parent=5 // pred_check
        _
      $region30: #{tpu_custom_call.1} parent=5 // pred_check_branch
        %221 = sbr.rel (%p218) target = $region32
      $region31: #{tpu_custom_call.1} parent=5 // pred_region
        %s222 = ssub.s32 %s18, 1
        %s223 = sand.u32 %s45, 1
        %s224 = scalar_lea.sflag [#allocation3], %s223
        %s225 = sand.u32 %s45, 1
        %s226 = smul.addr %s225, 8
        %s227 = scalar_lea.vmem [#allocation2], %s226
        // Predicated region
        $region33: #{tpu_custom_call.1} parent=31 // pred_check
          %p228 = pneg %p58
        $region34: #{tpu_custom_call.1} parent=31 // pred_check_branch
          %230 = sbr.rel (%p228) target = $region36
        $region35: #{tpu_custom_call.1} parent=31 // pred_region
          %232 = dma.done %s224, 128
        $region36: #{tpu_custom_call.1} parent=31 // pred_fallthru
          _
        %s233 = sand.u32 %s23, 1
        %s234 = scalar_lea.sflag [#allocation6], %s233
        %s235 = sand.u32 %s71, 1
        %s236 = smul.addr %s235, 8
        %s237 = scalar_lea.vmem [#allocation5], %s236
        // Predicated region
        $region37: #{tpu_custom_call.1} parent=31 // pred_check
          %p238 = pneg %p84
        $region38: #{tpu_custom_call.1} parent=31 // pred_check_branch
          %240 = sbr.rel (%p238) target = $region40
        $region39: #{tpu_custom_call.1} parent=31 // pred_region
          %242 = dma.done %s234, 128
        $region40: #{tpu_custom_call.1} parent=31 // pred_fallthru
          _
        %s243 = sand.u32 %s23, 1
        %s244 = scalar_lea.sflag [#allocation6], %s243
        %s245 = sand.u32 %s97, 1
        %s246 = smul.addr %s245, 8
        %s247 = scalar_lea.vmem [#allocation7], %s246
        // Predicated region
        $region41: #{tpu_custom_call.1} parent=31 // pred_check
          %p248 = pneg %p110
        $region42: #{tpu_custom_call.1} parent=31 // pred_check_branch
          %250 = sbr.rel (%p248) target = $region44
        $region43: #{tpu_custom_call.1} parent=31 // pred_region
          %252 = dma.done %s244, 128
        $region44: #{tpu_custom_call.1} parent=31 // pred_fallthru
          _
        %s253 = sand.u32 %s45, 1
        %s254 = scalar_lea.sflag [#allocation3], %s253
        %s255 = sand.u32 %s45, 1
        %s256 = smul.addr %s255, 8
        %s257 = scalar_lea.vmem [#allocation2], %s256
        %p258 = pneg %p58
        %p259 = pneg %p55
        %s260 = sand.u32 %s23, 1
        %s261 = scalar_lea.sflag [#allocation6], %s260
        %s262 = sand.u32 %s71, 1
        %s263 = smul.addr %s262, 8
        %s264 = scalar_lea.vmem [#allocation5], %s263
        %p265 = pneg %p84
        %p266 = pneg %p81
        %s267 = sand.u32 %s23, 1
        %s268 = scalar_lea.sflag [#allocation6], %s267
        %s269 = sand.u32 %s97, 1
        %s270 = smul.addr %s269, 8
        %s271 = scalar_lea.vmem [#allocation7], %s270
        %p272 = pneg %p110
        %p273 = pneg %p107
        %p274 = pneg %p138
        %p275 = pneg %p135
        %s276 = sand.u32 %s125, 1
        %s277 = scalar_lea.sflag [#allocation4], %s276
        %s278 = sand.u32 %s125, 1
        %s279 = smul.addr %s278, 8
        %s280 = scalar_lea.vmem [#allocation8], %s279
        %v281 = vld [vmem:[%s227] sm:$0xff]
        %v282 = vld [vmem:[%s237] sm:$0xff]
        %v283 = vld [vmem:[%s247] sm:$0xff]
        %285 = vrot.lane.b32.xlu0 %v281, 127
        %v286 = vpop.permute.xlu0 %285
        %288 = vrot.lane.b32.xlu0 %v281, 1
        %v289 = vpop.permute.xlu0 %288
        %v291 = vlaneseq
        %v292 = vand.u32 %v291, 127
        %v293 = vand.u32 %v292, 1
        %vm294 = vcmp.eq.s32.totalorder %v293, 0
        %v295 = vsel %vm294, %v286, %v289
        %v296 = vmul.f32 %v281, %v282
        %v297 = vmul.f32 %v295, %v283
        %v298 = vadd.f32 %v296, %v297
        %299 = vst [vmem:[%s280] sm:$0xff] %v298
        %s300 = sand.u32 %s125, 1
        %s301 = scalar_lea.sflag [#allocation4], %s300
        %s302 = sand.u32 %s125, 1
        %s303 = smul.addr %s302, 8
        %s304 = scalar_lea.vmem [#allocation8], %s303
        // Predicated region
        $region45: #{tpu_custom_call.1} parent=31 // pred_check
          %p305 = pneg %p135
        $region46: #{tpu_custom_call.1} parent=31 // pred_check_branch
          %307 = sbr.rel (%p305) target = $region48
        $region47: #{tpu_custom_call.1} parent=31 // pred_region
          %309 = vsyncadd %s301, 0
          %s310 = smul.addr %s28, 4
          %s311 = sadd.s32 %s27, %s310
          %s312 = smul.addr %s311, 8
          %s313 = scalar_lea.hbm %s3, %s312
          %s315 = sshll.u32 %s304, 4
          %s316 = int_to_ptr.vmem [resolvable:$true] %s315
          %s317 = sshll.u32 %s313, 4
          %s318 = int_to_ptr.hbm [resolvable:$true] %s317
          %320 = dma.vmem_to_hbm [thread:$0]  %s316, 128, %s318, %s301
        $region48: #{tpu_custom_call.1} parent=31 // pred_fallthru
          _
      $region32: #{tpu_custom_call.1} parent=5 // pred_fallthru
        _
      %p321 = scmp.le.s32.totalorder 2, %s18
      // Predicated region
      $region49: #{tpu_custom_call.1} parent=5 // pred_check
        %p322 = pneg %p321
      $region50: #{tpu_custom_call.1} parent=5 // pred_check_branch
        %324 = sbr.rel (%p322) target = $region52
      $region51: #{tpu_custom_call.1} parent=5 // pred_region
        %s325 = ssub.s32 %s18, 2
        // Predicated region
        $region53: #{tpu_custom_call.1} parent=51 // pred_check
          %p326 = pneg %p141
        $region54: #{tpu_custom_call.1} parent=51 // pred_check_branch
          %328 = sbr.rel (%p326) target = $region56
        $region55: #{tpu_custom_call.1} parent=51 // pred_region
          %s329 = sand.u32 %s126, 1
          %s330 = scalar_lea.sflag [#allocation4], %s329
          %s331 = sand.u32 %s126, 1
          %s332 = smul.addr %s331, 8
          %s333 = scalar_lea.vmem [#allocation8], %s332
          %335 = dma.done %s330, 128
        $region56: #{tpu_custom_call.1} parent=51 // pred_fallthru
          _
      $region52: #{tpu_custom_call.1} parent=5 // pred_fallthru
        _
    $region6: #{tpu_custom_call.1} parent=1 // loop_footer
      %s22 = sadd.s32 1, %s18
    $region7: #{tpu_custom_call.1} parent=1 // loop_footer_branch
      %17 = sbr.rel target = $region3
    $region8: #{tpu_custom_call.1} parent=1 // loop_exit
      _
    %336 = vsyncpa [#allocation3], 1
    %s337 = scalar_lea.sflag [#allocation3], 1
    %338 = vsyncpa %s337, 1
    %339 = vsyncpa [#allocation6], 1
    %s340 = scalar_lea.sflag [#allocation6], 1
    %341 = vsyncpa %s340, 1
    %342 = vsyncpa [#allocation4], 1
    %s343 = scalar_lea.sflag [#allocation4], 1
    %344 = vsyncpa %s343, 1

</llo_original>
